<compile_context>
chip_gen: v5e
topology: v5e:2x2
jax: 0.10.0
libtpu: 0.0.40
codegen_flags: <defaults>
</compile_context>

<pallas_src>
import jax
import jax.numpy as jnp
from jax.experimental import pallas as pl
from jax.experimental.pallas import tpu as pltpu


# ----------------------------- parameter init ------------------------------ #

def _xavier_uniform(key, shape):
    # Matches torch.nn.init.xavier_uniform_ fan computation for >=2D tensors.
    rf = 1
    for s in shape[2:]:
        rf *= s
    fan_in = shape[1] * rf
    fan_out = shape[0] * rf
    limit = (6.0 / (fan_in + fan_out)) ** 0.5
    return jax.random.uniform(key, shape, jnp.float32, -limit, limit)


def _linear_init(key, in_f, out_f):
    k1, k2 = jax.random.split(key)
    bound = 1.0 / (in_f ** 0.5)
    w = jax.random.uniform(k1, (out_f, in_f), jnp.float32, -bound, bound)
    b = jax.random.uniform(k2, (out_f,), jnp.float32, -bound, bound)
    return w, b


def init_multi_linear_params(key, c_in, c_out, channels, nodes, order):
    keys = jax.random.split(key, 8)
    params = {}
    params["res_weight"] = _xavier_uniform(keys[0], (channels, nodes, c_in, c_out, order))
    params["res_bias"] = _xavier_uniform(keys[1], (1, channels, nodes, 1, 1))
    ow, ob = _linear_init(keys[2], order, 1)        # order_mlp: Linear(order, 1)
    params["order_w"], params["order_b"] = ow, ob   # (1, order), (1,)
    params["gate_w1"], params["gate_b1"] = _linear_init(keys[3], c_in, c_out)
    params["gate_w2"], params["gate_b2"] = _linear_init(keys[4], c_in, c_out)
    params["mlp_w1"], params["mlp_b1"] = _linear_init(keys[5], c_in, c_out)
    params["mlp_w2"], params["mlp_b2"] = _linear_init(keys[6], c_out, c_out)
    return params


# --------------------------------- kernel ---------------------------------- #

def multi_linear_kernel(h_ref,                 # (B, N*order*I)   per-channel activations, fused K
                        x_ref,                 # (B, N*I)         raw x, node axis in lanes
                        w_ref,                 # (N*order*I, N*O) block-diag poly weight (order_mlp folded)
                        pb_ref,                # (1, N*O)         folded res_bias + order_mlp bias
                        gw1_ref, gb1_ref,      # gate 1: (N*I, N*O), (1, N*O)
                        gw2_ref, gb2_ref,      # gate 2
                        mw1_ref, mb1_ref,      # shared MLP layer 1
                        mw2_ref, mb2_ref,      # shared MLP layer 2: (N*O, N*O), (1, N*O)
                        y_ref):                # (B, N*O)
    # Polynomial branch: ONE matmul with K = order*c_in, block-diagonal over nodes.
    x_uniq = jnp.dot(h_ref[...], w_ref[...],
                     preferred_element_type=jnp.float32) + pb_ref[...]

    # Shared gates + shared MLP on the raw x, full node slab at once.
    x = x_ref[...]
    g1 = jax.nn.sigmoid(
        jnp.dot(x, gw1_ref[...], preferred_element_type=jnp.float32) + gb1_ref[...])
    g2 = jax.nn.sigmoid(
        jnp.dot(x, gw2_ref[...], preferred_element_type=jnp.float32) + gb2_ref[...])
    hmid = jnp.maximum(
        jnp.dot(x, mw1_ref[...], preferred_element_type=jnp.float32) + mb1_ref[...], 0.0)
    x_share = jnp.dot(hmid.astype(mw2_ref.dtype), mw2_ref[...],
                      preferred_element_type=jnp.float32) + mb2_ref[...]

    # Elementwise combine in f32; lane-dense (B, N*O) store.
    y_ref[...] = (g1 * x_uniq + g2 * x_share).astype(y_ref.dtype)


# -------------------------------- wrapper ----------------------------------- #

def multi_linear_forward(x, params, order, *, compute_dtype=jnp.float32):
    """x: (B, channels, nodes, c_in) -> (B, channels, nodes, c_out).

    compute_dtype: dtype of the matmul operands (bf16 recommended on v6e/v7x);
    accumulation and all elementwise math stay float32.
    """
    B, C, N, I = x.shape
    O = params["gate_w1"].shape[0]
    K = order * I

    # --- build h = [x, BN(x^2), ..., BN(x^order)] directly in kernel layout ---
    # (BatchNorm2d training-mode batch stats, affine at init gamma=1, beta=0.)
    x_c = jnp.transpose(x, (1, 0, 2, 3)).astype(jnp.float32)    # (C, B, N, I)
    hs = [x_c]
    x0 = x_c
    for _ in range(1, order):
        x0 = x0 * x_c
        mean = jnp.mean(x0, axis=(1, 2, 3), keepdims=True)
        var = jnp.var(x0, axis=(1, 2, 3), keepdims=True)
        hs.append((x0 - mean) * jax.lax.rsqrt(var + 1e-5))
    h = jnp.stack(hs, axis=3)                                   # (C, B, N, order, I)
    h_flat = h.reshape(C, B, N * K)                             # fused K per node
    x_flat = x_c.reshape(C, B, N * I)

    # --- fold order_mlp into the polynomial weights; block-diagonal over nodes ---
    #   order_mlp(e + rb)[..., 0] = sum_d e_d * w_d + rb * sum_d w_d + b
    w_order = params["order_w"][0]                              # (order,)
    b_order = params["order_b"][0]                              # scalar
    scaled = params["res_weight"] * w_order                     # (C, N, I, O, order)
    w_cn = jnp.transpose(scaled, (0, 1, 4, 2, 3)).reshape(C, N, K, O)
    eye_n = jnp.eye(N, dtype=jnp.float32)
    w_bd = jnp.einsum("cnko,nm->cnkmo", w_cn, eye_n).reshape(C, N * K, N * O)

    rb = params["res_bias"][0, :, :, 0, 0]                      # (C, N)
    bias_cn = rb * jnp.sum(w_order) + b_order                   # (C, N)
    pb = jnp.repeat(bias_cn, O, axis=1).reshape(C, 1, N * O).astype(jnp.float32)

    # --- shared gate / MLP weights, block-diagonal over nodes; biases tiled ---
    def block_diag(w_t):  # w_t: (in, out) -> (N*in, N*out)
        return jnp.einsum("io,nm->nimo", w_t, eye_n).reshape(
            N * w_t.shape[0], N * w_t.shape[1])

    gw1 = block_diag(params["gate_w1"].T)
    gw2 = block_diag(params["gate_w2"].T)
    mw1 = block_diag(params["mlp_w1"].T)
    mw2 = block_diag(params["mlp_w2"].T)
    gb1 = jnp.tile(params["gate_b1"], N).reshape(1, N * O).astype(jnp.float32)
    gb2 = jnp.tile(params["gate_b2"], N).reshape(1, N * O).astype(jnp.float32)
    mb1 = jnp.tile(params["mlp_b1"], N).reshape(1, N * O).astype(jnp.float32)
    mb2 = jnp.tile(params["mlp_b2"], N).reshape(1, N * O).astype(jnp.float32)

    # Matmul operands in compute_dtype; biases / elementwise stay f32.
    h_flat = h_flat.astype(compute_dtype)
    x_flat = x_flat.astype(compute_dtype)
    w_bd = w_bd.astype(compute_dtype)
    gw1, gw2 = gw1.astype(compute_dtype), gw2.astype(compute_dtype)
    mw1, mw2 = mw1.astype(compute_dtype), mw2.astype(compute_dtype)

    const2 = lambda c: (0, 0)
    y_cb = pl.pallas_call(
        multi_linear_kernel,
        out_shape=jax.ShapeDtypeStruct((C, B, N * O), jnp.float32),
        grid=(C,),
        in_specs=[
            pl.BlockSpec((None, B, N * K), lambda c: (c, 0, 0)),       # h_flat
            pl.BlockSpec((None, B, N * I), lambda c: (c, 0, 0)),       # x_flat
            pl.BlockSpec((None, N * K, N * O), lambda c: (c, 0, 0)),   # w_bd
            pl.BlockSpec((None, 1, N * O), lambda c: (c, 0, 0)),       # pb
            pl.BlockSpec((N * I, N * O), const2), pl.BlockSpec((1, N * O), const2),  # gate1
            pl.BlockSpec((N * I, N * O), const2), pl.BlockSpec((1, N * O), const2),  # gate2
            pl.BlockSpec((N * I, N * O), const2), pl.BlockSpec((1, N * O), const2),  # mlp l1
            pl.BlockSpec((N * O, N * O), const2), pl.BlockSpec((1, N * O), const2),  # mlp l2
        ],
        out_specs=pl.BlockSpec((None, B, N * O), lambda c: (c, 0, 0)),
        compiler_params=pltpu.CompilerParams(
            dimension_semantics=("parallel",)),   # size C >= 2 -> v7x megacore sharding
    )(h_flat, x_flat, w_bd, pb, gw1, gb1, gw2, gb2, mw1, mb1, mw2, mb2)

    # (C, B, N*O) -> (B, C, N, O). Tiny slab; reshape + one small transpose.
    return jnp.transpose(y_cb.reshape(C, B, N, O), (1, 0, 2, 3))


# ---------------------------- pure-JAX reference ---------------------------- #

def multi_linear_ref(x, params, order):
    hs = [x]
    x0 = x
    for _ in range(1, order):
        x0 = x0 * x
        mean = jnp.mean(x0, axis=(0, 2, 3), keepdims=True)
        var = jnp.var(x0, axis=(0, 2, 3), keepdims=True)
        hs.append((x0 - mean) / jnp.sqrt(var + 1e-5))
    h = jnp.stack(hs, axis=-1)
    x_uniq = jnp.einsum("BCNID,CNIOD->BCNOD", h, params["res_weight"]) + params["res_bias"]
    x_uniq = jnp.einsum("BCNOD,D->BCNO", x_uniq, params["order_w"][0]) + params["order_b"][0]
    gate1 = jax.nn.sigmoid(x @ params["gate_w1"].T + params["gate_b1"])
    gate2 = jax.nn.sigmoid(x @ params["gate_w2"].T + params["gate_b2"])
    x_share = (jnp.maximum(x @ params["mlp_w1"].T + params["mlp_b1"], 0.0)
               @ params["mlp_w2"].T + params["mlp_b2"])
    return gate1 * x_uniq + gate2 * x_share


# ----------------------------------- main ----------------------------------- #

if __name__ == "__main__":
    B, channels, nodes, c_in, c_out, order = 2, 4, 8, 16, 16, 2

    key = jax.random.PRNGKey(0)
    k_param, k_x = jax.random.split(key)
    params = init_multi_linear_params(k_param, c_in, c_out, channels, nodes, order)
    x = jax.random.normal(k_x, (B, channels, nodes, c_in), jnp.float32)

    y_ref = jax.block_until_ready(multi_linear_ref(x, params, order))

    # f32 operands: tight correctness check.
    y = jax.block_until_ready(multi_linear_forward(x, params, order))
    assert y.shape == (B, channels, nodes, c_out)
    assert jnp.allclose(y, y_ref, rtol=1e-4, atol=1e-4), float(jnp.max(jnp.abs(y - y_ref)))

    # bf16 matmul operands (v6e/v7x recommendation), f32 accumulation: loose check.
    y_bf16 = jax.block_until_ready(
        multi_linear_forward(x, params, order, compute_dtype=jnp.bfloat16))
    assert jnp.allclose(y_bf16, y_ref, rtol=5e-2, atol=5e-2), float(
        jnp.max(jnp.abs(y_bf16 - y_ref)))

    print("KERNEL_OK")
</pallas_src>

<mosaic_0001>
module attributes {stable_mosaic.version = 11 : i64} {
  func.func @multi_linear_kernel(%arg0: i32, %arg1: memref<1x2x256xf32, #tpu.memory_space<vmem>>, %arg2: memref<1x2x128xf32, #tpu.memory_space<vmem>>, %arg3: memref<1x256x128xf32, #tpu.memory_space<vmem>>, %arg4: memref<1x1x128xf32, #tpu.memory_space<vmem>>, %arg5: memref<128x128xf32, #tpu.memory_space<vmem>>, %arg6: memref<1x128xf32, #tpu.memory_space<vmem>>, %arg7: memref<128x128xf32, #tpu.memory_space<vmem>>, %arg8: memref<1x128xf32, #tpu.memory_space<vmem>>, %arg9: memref<128x128xf32, #tpu.memory_space<vmem>>, %arg10: memref<1x128xf32, #tpu.memory_space<vmem>>, %arg11: memref<128x128xf32, #tpu.memory_space<vmem>>, %arg12: memref<1x128xf32, #tpu.memory_space<vmem>>, %arg13: memref<1x2x128xf32, #tpu.memory_space<vmem>>) attributes {dimension_semantics = [#tpu.dimension_semantics<parallel>], iteration_bounds = array<i64: 4>, scalar_prefetch = 0 : i64, scratch_operands = 0 : i64, tpu.core_type = #tpu.core_type<tc>, window_params = [{transform_indices = @transform_0, window_bounds = array<i64: 1, 2, 256>}, {transform_indices = @transform_1, window_bounds = array<i64: 1, 2, 128>}, {transform_indices = @transform_2, window_bounds = array<i64: 1, 256, 128>}, {transform_indices = @transform_3, window_bounds = array<i64: 1, 1, 128>}, {pipeline_mode = #tpu.pipeline_mode<synchronous>, transform_indices = @transform_4, window_bounds = array<i64: 128, 128>}, {pipeline_mode = #tpu.pipeline_mode<synchronous>, transform_indices = @transform_5, window_bounds = array<i64: 1, 128>}, {pipeline_mode = #tpu.pipeline_mode<synchronous>, transform_indices = @transform_6, window_bounds = array<i64: 128, 128>}, {pipeline_mode = #tpu.pipeline_mode<synchronous>, transform_indices = @transform_7, window_bounds = array<i64: 1, 128>}, {pipeline_mode = #tpu.pipeline_mode<synchronous>, transform_indices = @transform_8, window_bounds = array<i64: 128, 128>}, {pipeline_mode = #tpu.pipeline_mode<synchronous>, transform_indices = @transform_9, window_bounds = array<i64: 1, 128>}, {pipeline_mode = #tpu.pipeline_mode<synchronous>, transform_indices = @transform_10, window_bounds = array<i64: 128, 128>}, {pipeline_mode = #tpu.pipeline_mode<synchronous>, transform_indices = @transform_11, window_bounds = array<i64: 1, 128>}, {transform_indices = @transform_12, window_bounds = array<i64: 1, 2, 128>}]} {
    %c0 = arith.constant 0 : index
    %c0_0 = arith.constant 0 : index
    %c0_1 = arith.constant 0 : index
    %0 = vector.load %arg1[%c0, %c0_0, %c0_1] : memref<1x2x256xf32, #tpu.memory_space<vmem>>, vector<1x2x256xf32>
    %1 = vector.shape_cast %0 : vector<1x2x256xf32> to vector<2x256xf32>
    %c0_2 = arith.constant 0 : index
    %c0_3 = arith.constant 0 : index
    %c0_4 = arith.constant 0 : index
    %2 = vector.load %arg3[%c0_2, %c0_3, %c0_4] : memref<1x256x128xf32, #tpu.memory_space<vmem>>, vector<1x256x128xf32>
    %3 = vector.shape_cast %2 : vector<1x256x128xf32> to vector<256x128xf32>
    %cst = arith.constant dense<0.000000e+00> : vector<2x128xf32>
    %4 = tpu.matmul %1, %3, %cst {dimension_numbers = #tpu.dot_dimension_numbers<[1], [0], [0], [1], [0, 0, 1, 1], [], []>} : vector<2x256xf32>, vector<256x128xf32>, vector<2x128xf32> -> vector<2x128xf32>
    %c0_5 = arith.constant 0 : index
    %c0_6 = arith.constant 0 : index
    %c0_7 = arith.constant 0 : index
    %5 = vector.load %arg4[%c0_5, %c0_6, %c0_7] : memref<1x1x128xf32, #tpu.memory_space<vmem>>, vector<1x1x128xf32>
    %6 = vector.shape_cast %5 : vector<1x1x128xf32> to vector<1x128xf32>
    %7 = vector.broadcast %6 : vector<1x128xf32> to vector<2x128xf32>
    %8 = arith.addf %4, %7 : vector<2x128xf32>
    %c0_8 = arith.constant 0 : index
    %c0_9 = arith.constant 0 : index
    %c0_10 = arith.constant 0 : index
    %9 = vector.load %arg2[%c0_8, %c0_9, %c0_10] : memref<1x2x128xf32, #tpu.memory_space<vmem>>, vector<1x2x128xf32>
    %10 = vector.shape_cast %9 : vector<1x2x128xf32> to vector<2x128xf32>
    %c0_11 = arith.constant 0 : index
    %c0_12 = arith.constant 0 : index
    %11 = vector.load %arg5[%c0_11, %c0_12] : memref<128x128xf32, #tpu.memory_space<vmem>>, vector<128x128xf32>
    %cst_13 = arith.constant dense<0.000000e+00> : vector<2x128xf32>
    %12 = tpu.matmul %10, %11, %cst_13 {dimension_numbers = #tpu.dot_dimension_numbers<[1], [0], [0], [1], [0, 0, 1, 1], [], []>} : vector<2x128xf32>, vector<128x128xf32>, vector<2x128xf32> -> vector<2x128xf32>
    %c0_14 = arith.constant 0 : index
    %c0_15 = arith.constant 0 : index
    %13 = vector.load %arg6[%c0_14, %c0_15] : memref<1x128xf32, #tpu.memory_space<vmem>>, vector<1x128xf32>
    %14 = vector.broadcast %13 : vector<1x128xf32> to vector<2x128xf32>
    %15 = arith.addf %12, %14 : vector<2x128xf32>
    %16 = arith.negf %15 : vector<2x128xf32>
    %17 = math.exp %16 : vector<2x128xf32>
    %cst_16 = arith.constant 1.000000e+00 : f32
    %18 = vector.broadcast %cst_16 : f32 to vector<2x128xf32>
    %19 = arith.addf %18, %17 : vector<2x128xf32>
    %20 = arith.divf %18, %19 : vector<2x128xf32>
    %c0_17 = arith.constant 0 : index
    %c0_18 = arith.constant 0 : index
    %21 = vector.load %arg7[%c0_17, %c0_18] : memref<128x128xf32, #tpu.memory_space<vmem>>, vector<128x128xf32>
    %cst_19 = arith.constant dense<0.000000e+00> : vector<2x128xf32>
    %22 = tpu.matmul %10, %21, %cst_19 {dimension_numbers = #tpu.dot_dimension_numbers<[1], [0], [0], [1], [0, 0, 1, 1], [], []>} : vector<2x128xf32>, vector<128x128xf32>, vector<2x128xf32> -> vector<2x128xf32>
    %c0_20 = arith.constant 0 : index
    %c0_21 = arith.constant 0 : index
    %23 = vector.load %arg8[%c0_20, %c0_21] : memref<1x128xf32, #tpu.memory_space<vmem>>, vector<1x128xf32>
    %24 = vector.broadcast %23 : vector<1x128xf32> to vector<2x128xf32>
    %25 = arith.addf %22, %24 : vector<2x128xf32>
    %26 = arith.negf %25 : vector<2x128xf32>
    %27 = math.exp %26 : vector<2x128xf32>
    %cst_22 = arith.constant 1.000000e+00 : f32
    %28 = vector.broadcast %cst_22 : f32 to vector<2x128xf32>
    %29 = arith.addf %28, %27 : vector<2x128xf32>
    %30 = arith.divf %28, %29 : vector<2x128xf32>
    %c0_23 = arith.constant 0 : index
    %c0_24 = arith.constant 0 : index
    %31 = vector.load %arg9[%c0_23, %c0_24] : memref<128x128xf32, #tpu.memory_space<vmem>>, vector<128x128xf32>
    %cst_25 = arith.constant dense<0.000000e+00> : vector<2x128xf32>
    %32 = tpu.matmul %10, %31, %cst_25 {dimension_numbers = #tpu.dot_dimension_numbers<[1], [0], [0], [1], [0, 0, 1, 1], [], []>} : vector<2x128xf32>, vector<128x128xf32>, vector<2x128xf32> -> vector<2x128xf32>
    %c0_26 = arith.constant 0 : index
    %c0_27 = arith.constant 0 : index
    %33 = vector.load %arg10[%c0_26, %c0_27] : memref<1x128xf32, #tpu.memory_space<vmem>>, vector<1x128xf32>
    %34 = vector.broadcast %33 : vector<1x128xf32> to vector<2x128xf32>
    %35 = arith.addf %32, %34 : vector<2x128xf32>
    %cst_28 = arith.constant 0.000000e+00 : f32
    %36 = vector.broadcast %cst_28 : f32 to vector<2x128xf32>
    %37 = arith.maximumf %35, %36 : vector<2x128xf32>
    %c0_29 = arith.constant 0 : index
    %c0_30 = arith.constant 0 : index
    %38 = vector.load %arg11[%c0_29, %c0_30] : memref<128x128xf32, #tpu.memory_space<vmem>>, vector<128x128xf32>
    %cst_31 = arith.constant dense<0.000000e+00> : vector<2x128xf32>
    %39 = tpu.matmul %37, %38, %cst_31 {dimension_numbers = #tpu.dot_dimension_numbers<[1], [0], [0], [1], [0, 0, 1, 1], [], []>} : vector<2x128xf32>, vector<128x128xf32>, vector<2x128xf32> -> vector<2x128xf32>
    %c0_32 = arith.constant 0 : index
    %c0_33 = arith.constant 0 : index
    %40 = vector.load %arg12[%c0_32, %c0_33] : memref<1x128xf32, #tpu.memory_space<vmem>>, vector<1x128xf32>
    %41 = vector.broadcast %40 : vector<1x128xf32> to vector<2x128xf32>
    %42 = arith.addf %39, %41 : vector<2x128xf32>
    %43 = arith.mulf %20, %8 : vector<2x128xf32>
    %44 = arith.mulf %30, %42 : vector<2x128xf32>
    %45 = arith.addf %43, %44 : vector<2x128xf32>
    %c0_34 = arith.constant 0 : index
    %c0_35 = arith.constant 0 : index
    %c0_36 = arith.constant 0 : index
    %46 = vector.load %arg13[%c0_34, %c0_35, %c0_36] : memref<1x2x128xf32, #tpu.memory_space<vmem>>, vector<1x2x128xf32>
    %47 = vector.shape_cast %46 : vector<1x2x128xf32> to vector<2x128xf32>
    %48 = vector.shape_cast %45 : vector<2x128xf32> to vector<1x2x128xf32>
    tpu.vector_store %arg13[%c0_34, %c0_35, %c0_36], %48 {strides = array<i32>} : memref<1x2x128xf32, #tpu.memory_space<vmem>>, vector<1x2x128xf32>,
    return
  }
  func.func @transform_0(%arg0: i32) -> (i32, i32, i32) {
    %c0_i32 = arith.constant 0 : i32
    %c0_i32_0 = arith.constant 0 : i32
    %c0_i32_1 = arith.constant 0 : i32
    return %arg0, %c0_i32, %c0_i32_0 : i32, i32, i32
  }
  func.func @transform_1(%arg0: i32) -> (i32, i32, i32) {
    %c0_i32 = arith.constant 0 : i32
    %c0_i32_0 = arith.constant 0 : i32
    %c0_i32_1 = arith.constant 0 : i32
    return %arg0, %c0_i32, %c0_i32_0 : i32, i32, i32
  }
  func.func @transform_2(%arg0: i32) -> (i32, i32, i32) {
    %c0_i32 = arith.constant 0 : i32
    %c0_i32_0 = arith.constant 0 : i32
    %c0_i32_1 = arith.constant 0 : i32
    return %arg0, %c0_i32, %c0_i32_0 : i32, i32, i32
  }
  func.func @transform_3(%arg0: i32) -> (i32, i32, i32) {
    %c0_i32 = arith.constant 0 : i32
    %c0_i32_0 = arith.constant 0 : i32
    %c0_i32_1 = arith.constant 0 : i32
    return %arg0, %c0_i32, %c0_i32_0 : i32, i32, i32
  }
  func.func @transform_4(%arg0: i32) -> (i32, i32) {
    %c0_i32 = arith.constant 0 : i32
    %c0_i32_0 = arith.constant 0 : i32
    %c0_i32_1 = arith.constant 0 : i32
    return %c0_i32, %c0_i32_0 : i32, i32
  }
  func.func @transform_5(%arg0: i32) -> (i32, i32) {
    %c0_i32 = arith.constant 0 : i32
    %c0_i32_0 = arith.constant 0 : i32
    %c0_i32_1 = arith.constant 0 : i32
    return %c0_i32, %c0_i32_0 : i32, i32
  }
  func.func @transform_6(%arg0: i32) -> (i32, i32) {
    %c0_i32 = arith.constant 0 : i32
    %c0_i32_0 = arith.constant 0 : i32
    %c0_i32_1 = arith.constant 0 : i32
    return %c0_i32, %c0_i32_0 : i32, i32
  }
  func.func @transform_7(%arg0: i32) -> (i32, i32) {
    %c0_i32 = arith.constant 0 : i32
    %c0_i32_0 = arith.constant 0 : i32
    %c0_i32_1 = arith.constant 0 : i32
    return %c0_i32, %c0_i32_0 : i32, i32
  }
  func.func @transform_8(%arg0: i32) -> (i32, i32) {
    %c0_i32 = arith.constant 0 : i32
    %c0_i32_0 = arith.constant 0 : i32
    %c0_i32_1 = arith.constant 0 : i32
    return %c0_i32, %c0_i32_0 : i32, i32
  }
  func.func @transform_9(%arg0: i32) -> (i32, i32) {
    %c0_i32 = arith.constant 0 : i32
    %c0_i32_0 = arith.constant 0 : i32
    %c0_i32_1 = arith.constant 0 : i32
    return %c0_i32, %c0_i32_0 : i32, i32
  }
  func.func @transform_10(%arg0: i32) -> (i32, i32) {
    %c0_i32 = arith.constant 0 : i32
    %c0_i32_0 = arith.constant 0 : i32
    %c0_i32_1 = arith.constant 0 : i32
    return %c0_i32, %c0_i32_0 : i32, i32
  }
  func.func @transform_11(%arg0: i32) -> (i32, i32) {
    %c0_i32 = arith.constant 0 : i32
    %c0_i32_0 = arith.constant 0 : i32
    %c0_i32_1 = arith.constant 0 : i32
    return %c0_i32, %c0_i32_0 : i32, i32
  }
  func.func @transform_12(%arg0: i32) -> (i32, i32, i32) {
    %c0_i32 = arith.constant 0 : i32
    %c0_i32_0 = arith.constant 0 : i32
    %c0_i32_1 = arith.constant 0 : i32
    return %arg0, %c0_i32, %c0_i32_0 : i32, i32, i32
  }
}

</mosaic_0001>

<llo_original>
// kernel: tpu_custom_call.1
$region0: #{tpu_custom_call.1}
  #allocation0 [shape = 'u32[]', space=smem, size = 0x4, offset = 0x4, fixed_abs, tag = 'smem constant byte address 0x4 - core index']
  #allocation1 [shape = 'u32[72,128]{1,0:T(1,128)}', space=vmem, size = 0x9000, scoped, tag = 'internal scratch']
  %s0 = inlined_call_operand.hbm [shape: f32[4,2,256], index: 0, kind: input, shape index: {}]
  %s1 = inlined_call_operand.hbm [shape: f32[4,2,128], index: 1, kind: input, shape index: {}]
  %s2 = inlined_call_operand.hbm [shape: f32[4,256,128], index: 2, kind: input, shape index: {}]
  %s3 = inlined_call_operand.hbm [shape: f32[4,1,128], index: 3, kind: input, shape index: {}]
  %s4 = inlined_call_operand.hbm [shape: f32[128,128], index: 4, kind: input, shape index: {}]
  %s5 = inlined_call_operand.vmem [shape: f32[1,128], index: 5, kind: input, shape index: {}]
  %s6 = inlined_call_operand.hbm [shape: f32[128,128], index: 6, kind: input, shape index: {}]
  %s7 = inlined_call_operand.vmem [shape: f32[1,128], index: 7, kind: input, shape index: {}]
  %s8 = inlined_call_operand.hbm [shape: f32[128,128], index: 8, kind: input, shape index: {}]
  %s9 = inlined_call_operand.vmem [shape: f32[1,128], index: 9, kind: input, shape index: {}]
  %s10 = inlined_call_operand.hbm [shape: f32[128,128], index: 10, kind: input, shape index: {}]
  %s11 = inlined_call_operand.vmem [shape: f32[1,128], index: 11, kind: input, shape index: {}]
  %s12 = inlined_call_operand.hbm [shape: f32[4,2,128], index: 12, kind: output, shape index: {}]
  %s13 = sld [smem:[#allocation0]]
  $region113: #{tpu_custom_call.1} parent=0
    _
  %s15 = ssub.s32 1, %s13
  %s16 = scalar_select 0, %s15, %s13
  $region1: #{tpu_custom_call.1} parent=0
    #allocation2 [shape = 'u8[4096]{0}', space=vmem, size = 0x1000, scoped, tag = 'input window, operand 0']
    #allocation3 [shape = 's32[2]{0}', space=sflag, size = 0x8, scoped, tag = 'scoped memory for tpu_custom_call.1']
    #allocation4 [shape = 's32[2]{0}', space=sflag, size = 0x8, scoped, tag = 'scoped memory for tpu_custom_call.1']
    #allocation5 [shape = 'u8[2048]{0}', space=vmem, size = 0x800, scoped, tag = 'input window, operand 1']
    #allocation6 [shape = 's32[2]{0}', space=sflag, size = 0x8, scoped, tag = 'scoped memory for tpu_custom_call.1']
    #allocation7 [shape = 'u8[262144]{0}', space=vmem, size = 0x40000, scoped, tag = 'input window, operand 2']
    #allocation8 [shape = 'u8[1024]{0}', space=vmem, size = 0x400, scoped, tag = 'input window, operand 3']
    #allocation9 [shape = 's32[2]{0}', space=sflag, size = 0x8, scoped, tag = 'scoped memory for tpu_custom_call.1']
    #allocation10 [shape = 'u8[65536]{0}', space=vmem, size = 0x10000, scoped, tag = 'input window, operand 4, single buffered']
    #allocation11 [shape = 'u8[65536]{0}', space=vmem, size = 0x10000, scoped, tag = 'input window, operand 6, single buffered']
    #allocation12 [shape = 's32[1]{0}', space=sflag, size = 0x4, scoped, tag = 'scoped memory for tpu_custom_call.1']
    #allocation13 [shape = 'u8[65536]{0}', space=vmem, size = 0x10000, scoped, tag = 'input window, operand 8, single buffered']
    #allocation14 [shape = 'u8[65536]{0}', space=vmem, size = 0x10000, scoped, tag = 'input window, operand 10, single buffered']
    #allocation15 [shape = 's32[1]{0}', space=sflag, size = 0x4, scoped, tag = 'scoped memory for tpu_custom_call.1']
    #allocation16 [shape = 'u8[2048]{0}', space=vmem, size = 0x800, scoped, tag = 'output window, operand 0']
    %17 = vsyncpa [#allocation3], 0
    %s18 = scalar_lea.sflag [#allocation3], 1
    %19 = vsyncpa %s18, 0
    %20 = vsyncpa [#allocation6], 0
    %s21 = scalar_lea.sflag [#allocation6], 1
    %22 = vsyncpa %s21, 0
    %23 = vsyncpa [#allocation9], 0
    %s24 = scalar_lea.sflag [#allocation9], 1
    %25 = vsyncpa %s24, 0
    %26 = vsyncpa [#allocation12], 0
    %27 = vsyncpa [#allocation15], 0
    %28 = vsyncpa [#allocation4], 0
    %s29 = scalar_lea.sflag [#allocation4], 1
    %30 = vsyncpa %s29, 0
    loop: start=0, step=1, limit=6
    $region2: #{tpu_custom_call.1} parent=1 // loop_pre_header
      _
    $region3: #{tpu_custom_call.1} parent=1 // loop_header
      %s32 = sphi 0, %s36
      %p33 = scmp.ge.s32.totalorder %s32, 6
      %s42 = sphi 0, %s44
      %s45 = sphi 0, %s42
      %s46 = sphi 0, %s45
      %s62 = sphi 0, %s46
      %s68 = sphi 0, %s70
      %s71 = sphi 0, %s68
      %s72 = sphi 0, %s71
      %s88 = sphi 0, %s72
      %s94 = sphi 0, %s96
      %s97 = sphi 0, %s94
      %s98 = sphi 0, %s97
      %s114 = sphi 0, %s98
      %s120 = sphi 0, %s122
      %s123 = sphi 0, %s120
      %s124 = sphi 0, %s123
      %s140 = sphi 0, %s124
      %s144 = sphi 0, %s144
      %s146 = sphi 0, %s144
      %s147 = sphi 0, %s146
      %s161 = sphi 0, %s147
      %s165 = sphi 0, %s165
      %s167 = sphi 0, %s165
      %s168 = sphi 0, %s167
      %s182 = sphi 0, %s168
      %s186 = sphi 0, %s186
      %s188 = sphi 0, %s186
      %s189 = sphi 0, %s188
      %s203 = sphi 0, %s189
      %s207 = sphi 0, %s207
      %s209 = sphi 0, %s207
      %s210 = sphi 0, %s209
      %s224 = sphi 0, %s210
      %s228 = sphi 0, %s228
      %s230 = sphi 0, %s228
      %s231 = sphi 0, %s230
      %s245 = sphi 0, %s231
      %s249 = sphi 0, %s249
      %s251 = sphi 0, %s249
      %s252 = sphi 0, %s251
      %s266 = sphi 0, %s252
      %s270 = sphi 0, %s270
      %s272 = sphi 0, %s270
      %s273 = sphi 0, %s272
      %s287 = sphi 0, %s273
      %s291 = sphi 0, %s291
      %s293 = sphi 0, %s291
      %s294 = sphi 0, %s293
      %s308 = sphi 0, %s294
      %s314 = sphi 0, %s316
      %s317 = sphi 0, %s314
      %s318 = sphi 0, %s317
      %s334 = sphi 0, %s318
    $region4: #{tpu_custom_call.1} parent=1 // loop_header_branch
      %35 = sbr.rel (%p33) target = $region8
    $region5: #{tpu_custom_call.1} parent=1 // loop_body
      %s37 = ssub.s32 %s32, 1
      %s38 = ssub.s32 %s32, 2
      %s39 = sadd.s32 %s32, 1
      %s40 = ssub.s32 %s32, %s39
      %p41 = scmp.eq.s32.totalorder %s40, 0
      %s43 = sadd.s32 %s42, 1
      %s44 = scalar_select %p41, %s42, %s43
      %p47 = pneg %p41
      %p48 = scmp.eq.s32.totalorder %s32, 3
      %p49 = por %p47, %p48
      %p50 = scmp.ne.s32.totalorder %s42, %s45
      %p51 = scmp.eq.s32.totalorder %s32, 0
      %p52 = por %p50, %p51
      %p53 = scmp.ne.s32.totalorder %s42, %s45
      %p54 = scmp.eq.s32.totalorder %s37, 3
      %p55 = por %p53, %p54
      %p56 = scmp.ne.s32.totalorder %s45, %s46
      %p57 = scmp.eq.s32.totalorder %s37, 0
      %p58 = por %p56, %p57
      %p59 = scmp.ne.s32.totalorder %s45, %s46
      %p60 = scmp.eq.s32.totalorder %s38, 3
      %p61 = por %p59, %p60
      %p63 = scmp.ne.s32.totalorder %s46, %s62
      %p64 = scmp.eq.s32.totalorder %s38, 0
      %p65 = por %p63, %p64
      %s66 = ssub.s32 %s32, %s39
      %p67 = scmp.eq.s32.totalorder %s66, 0
      %s69 = sadd.s32 %s68, 1
      %s70 = scalar_select %p67, %s68, %s69
      %p73 = pneg %p67
      %p74 = scmp.eq.s32.totalorder %s32, 3
      %p75 = por %p73, %p74
      %p76 = scmp.ne.s32.totalorder %s68, %s71
      %p77 = scmp.eq.s32.totalorder %s32, 0
      %p78 = por %p76, %p77
      %p79 = scmp.ne.s32.totalorder %s68, %s71
      %p80 = scmp.eq.s32.totalorder %s37, 3
      %p81 = por %p79, %p80
      %p82 = scmp.ne.s32.totalorder %s71, %s72
      %p83 = scmp.eq.s32.totalorder %s37, 0
      %p84 = por %p82, %p83
      %p85 = scmp.ne.s32.totalorder %s71, %s72
      %p86 = scmp.eq.s32.totalorder %s38, 3
      %p87 = por %p85, %p86
      %p89 = scmp.ne.s32.totalorder %s72, %s88
      %p90 = scmp.eq.s32.totalorder %s38, 0
      %p91 = por %p89, %p90
      %s92 = ssub.s32 %s32, %s39
      %p93 = scmp.eq.s32.totalorder %s92, 0
      %s95 = sadd.s32 %s94, 1
      %s96 = scalar_select %p93, %s94, %s95
      %p99 = pneg %p93
      %p100 = scmp.eq.s32.totalorder %s32, 3
      %p101 = por %p99, %p100
      %p102 = scmp.ne.s32.totalorder %s94, %s97
      %p103 = scmp.eq.s32.totalorder %s32, 0
      %p104 = por %p102, %p103
      %p105 = scmp.ne.s32.totalorder %s94, %s97
      %p106 = scmp.eq.s32.totalorder %s37, 3
      %p107 = por %p105, %p106
      %p108 = scmp.ne.s32.totalorder %s97, %s98
      %p109 = scmp.eq.s32.totalorder %s37, 0
      %p110 = por %p108, %p109
      %p111 = scmp.ne.s32.totalorder %s97, %s98
      %p112 = scmp.eq.s32.totalorder %s38, 3
      %p113 = por %p111, %p112
      %p115 = scmp.ne.s32.totalorder %s98, %s114
      %p116 = scmp.eq.s32.totalorder %s38, 0
      %p117 = por %p115, %p116
      %s118 = ssub.s32 %s32, %s39
      %p119 = scmp.eq.s32.totalorder %s118, 0
      %s121 = sadd.s32 %s120, 1
      %s122 = scalar_select %p119, %s120, %s121
      %p125 = pneg %p119
      %p126 = scmp.eq.s32.totalorder %s32, 3
      %p127 = por %p125, %p126
      %p128 = scmp.ne.s32.totalorder %s120, %s123
      %p129 = scmp.eq.s32.totalorder %s32, 0
      %p130 = por %p128, %p129
      %p131 = scmp.ne.s32.totalorder %s120, %s123
      %p132 = scmp.eq.s32.totalorder %s37, 3
      %p133 = por %p131, %p132
      %p134 = scmp.ne.s32.totalorder %s123, %s124
      %p135 = scmp.eq.s32.totalorder %s37, 0
      %p136 = por %p134, %p135
      %p137 = scmp.ne.s32.totalorder %s123, %s124
      %p138 = scmp.eq.s32.totalorder %s38, 3
      %p139 = por %p137, %p138
      %p141 = scmp.ne.s32.totalorder %s124, %s140
      %p142 = scmp.eq.s32.totalorder %s38, 0
      %p143 = por %p141, %p142
      %s145 = sadd.s32 %s144, 1
      %p148 = scmp.eq.s32.totalorder %s32, 3
      %p149 = scmp.ne.s32.totalorder %s144, %s146
      %p150 = scmp.eq.s32.totalorder %s32, 0
      %p151 = por %p149, %p150
      %p152 = scmp.ne.s32.totalorder %s144, %s146
      %p153 = scmp.eq.s32.totalorder %s37, 3
      %p154 = por %p152, %p153
      %p155 = scmp.ne.s32.totalorder %s146, %s147
      %p156 = scmp.eq.s32.totalorder %s37, 0
      %p157 = por %p155, %p156
      %p158 = scmp.ne.s32.totalorder %s146, %s147
      %p159 = scmp.eq.s32.totalorder %s38, 3
      %p160 = por %p158, %p159
      %p162 = scmp.ne.s32.totalorder %s147, %s161
      %p163 = scmp.eq.s32.totalorder %s38, 0
      %p164 = por %p162, %p163
      %s166 = sadd.s32 %s165, 1
      %p169 = scmp.eq.s32.totalorder %s32, 3
      %p170 = scmp.ne.s32.totalorder %s165, %s167
      %p171 = scmp.eq.s32.totalorder %s32, 0
      %p172 = por %p170, %p171
      %p173 = scmp.ne.s32.totalorder %s165, %s167
      %p174 = scmp.eq.s32.totalorder %s37, 3
      %p175 = por %p173, %p174
      %p176 = scmp.ne.s32.totalorder %s167, %s168
      %p177 = scmp.eq.s32.totalorder %s37, 0
      %p178 = por %p176, %p177
      %p179 = scmp.ne.s32.totalorder %s167, %s168
      %p180 = scmp.eq.s32.totalorder %s38, 3
      %p181 = por %p179, %p180
      %p183 = scmp.ne.s32.totalorder %s168, %s182
      %p184 = scmp.eq.s32.totalorder %s38, 0
      %p185 = por %p183, %p184
      %s187 = sadd.s32 %s186, 1
      %p190 = scmp.eq.s32.totalorder %s32, 3
      %p191 = scmp.ne.s32.totalorder %s186, %s188
      %p192 = scmp.eq.s32.totalorder %s32, 0
      %p193 = por %p191, %p192
      %p194 = scmp.ne.s32.totalorder %s186, %s188
      %p195 = scmp.eq.s32.totalorder %s37, 3
      %p196 = por %p194, %p195
      %p197 = scmp.ne.s32.totalorder %s188, %s189
      %p198 = scmp.eq.s32.totalorder %s37, 0
      %p199 = por %p197, %p198
      %p200 = scmp.ne.s32.totalorder %s188, %s189
      %p201 = scmp.eq.s32.totalorder %s38, 3
      %p202 = por %p200, %p201
      %p204 = scmp.ne.s32.totalorder %s189, %s203
      %p205 = scmp.eq.s32.totalorder %s38, 0
      %p206 = por %p204, %p205
      %s208 = sadd.s32 %s207, 1
      %p211 = scmp.eq.s32.totalorder %s32, 3
      %p212 = scmp.ne.s32.totalorder %s207, %s209
      %p213 = scmp.eq.s32.totalorder %s32, 0
      %p214 = por %p212, %p213
      %p215 = scmp.ne.s32.totalorder %s207, %s209
      %p216 = scmp.eq.s32.totalorder %s37, 3
      %p217 = por %p215, %p216
      %p218 = scmp.ne.s32.totalorder %s209, %s210
      %p219 = scmp.eq.s32.totalorder %s37, 0
      %p220 = por %p218, %p219
      %p221 = scmp.ne.s32.totalorder %s209, %s210
      %p222 = scmp.eq.s32.totalorder %s38, 3
      %p223 = por %p221, %p222
      %p225 = scmp.ne.s32.totalorder %s210, %s224
      %p226 = scmp.eq.s32.totalorder %s38, 0
      %p227 = por %p225, %p226
      %s229 = sadd.s32 %s228, 1
      %p232 = scmp.eq.s32.totalorder %s32, 3
      %p233 = scmp.ne.s32.totalorder %s228, %s230
      %p234 = scmp.eq.s32.totalorder %s32, 0
      %p235 = por %p233, %p234
      %p236 = scmp.ne.s32.totalorder %s228, %s230
      %p237 = scmp.eq.s32.totalorder %s37, 3
      %p238 = por %p236, %p237
      %p239 = scmp.ne.s32.totalorder %s230, %s231
      %p240 = scmp.eq.s32.totalorder %s37, 0
      %p241 = por %p239, %p240
      %p242 = scmp.ne.s32.totalorder %s230, %s231
      %p243 = scmp.eq.s32.totalorder %s38, 3
      %p244 = por %p242, %p243
      %p246 = scmp.ne.s32.totalorder %s231, %s245
      %p247 = scmp.eq.s32.totalorder %s38, 0
      %p248 = por %p246, %p247
      %s250 = sadd.s32 %s249, 1
      %p253 = scmp.eq.s32.totalorder %s32, 3
      %p254 = scmp.ne.s32.totalorder %s249, %s251
      %p255 = scmp.eq.s32.totalorder %s32, 0
      %p256 = por %p254, %p255
      %p257 = scmp.ne.s32.totalorder %s249, %s251
      %p258 = scmp.eq.s32.totalorder %s37, 3
      %p259 = por %p257, %p258
      %p260 = scmp.ne.s32.totalorder %s251, %s252
      %p261 = scmp.eq.s32.totalorder %s37, 0
      %p262 = por %p260, %p261
      %p263 = scmp.ne.s32.totalorder %s251, %s252
      %p264 = scmp.eq.s32.totalorder %s38, 3
      %p265 = por %p263, %p264
      %p267 = scmp.ne.s32.totalorder %s252, %s266
      %p268 = scmp.eq.s32.totalorder %s38, 0
      %p269 = por %p267, %p268
      %s271 = sadd.s32 %s270, 1
      %p274 = scmp.eq.s32.totalorder %s32, 3
      %p275 = scmp.ne.s32.totalorder %s270, %s272
      %p276 = scmp.eq.s32.totalorder %s32, 0
      %p277 = por %p275, %p276
      %p278 = scmp.ne.s32.totalorder %s270, %s272
      %p279 = scmp.eq.s32.totalorder %s37, 3
      %p280 = por %p278, %p279
      %p281 = scmp.ne.s32.totalorder %s272, %s273
      %p282 = scmp.eq.s32.totalorder %s37, 0
      %p283 = por %p281, %p282
      %p284 = scmp.ne.s32.totalorder %s272, %s273
      %p285 = scmp.eq.s32.totalorder %s38, 3
      %p286 = por %p284, %p285
      %p288 = scmp.ne.s32.totalorder %s273, %s287
      %p289 = scmp.eq.s32.totalorder %s38, 0
      %p290 = por %p288, %p289
      %s292 = sadd.s32 %s291, 1
      %p295 = scmp.eq.s32.totalorder %s32, 3
      %p296 = scmp.ne.s32.totalorder %s291, %s293
      %p297 = scmp.eq.s32.totalorder %s32, 0
      %p298 = por %p296, %p297
      %p299 = scmp.ne.s32.totalorder %s291, %s293
      %p300 = scmp.eq.s32.totalorder %s37, 3
      %p301 = por %p299, %p300
      %p302 = scmp.ne.s32.totalorder %s293, %s294
      %p303 = scmp.eq.s32.totalorder %s37, 0
      %p304 = por %p302, %p303
      %p305 = scmp.ne.s32.totalorder %s293, %s294
      %p306 = scmp.eq.s32.totalorder %s38, 3
      %p307 = por %p305, %p306
      %p309 = scmp.ne.s32.totalorder %s294, %s308
      %p310 = scmp.eq.s32.totalorder %s38, 0
      %p311 = por %p309, %p310
      %s312 = ssub.s32 %s32, %s39
      %p313 = scmp.eq.s32.totalorder %s312, 0
      %s315 = sadd.s32 %s314, 1
      %s316 = scalar_select %p313, %s314, %s315
      %p319 = pneg %p313
      %p320 = scmp.eq.s32.totalorder %s32, 3
      %p321 = por %p319, %p320
      %p322 = scmp.ne.s32.totalorder %s314, %s317
      %p323 = scmp.eq.s32.totalorder %s32, 0
      %p324 = por %p322, %p323
      %p325 = scmp.ne.s32.totalorder %s314, %s317
      %p326 = scmp.eq.s32.totalorder %s37, 3
      %p327 = por %p325, %p326
      %p328 = scmp.ne.s32.totalorder %s317, %s318
      %p329 = scmp.eq.s32.totalorder %s37, 0
      %p330 = por %p328, %p329
      %p331 = scmp.ne.s32.totalorder %s317, %s318
      %p332 = scmp.eq.s32.totalorder %s38, 3
      %p333 = por %p331, %p332
      %p335 = scmp.ne.s32.totalorder %s318, %s334
      %p336 = scmp.eq.s32.totalorder %s38, 0
      %p337 = por %p335, %p336
      %p338 = scmp.le.s32.totalorder 1, %s32
      %p339 = scmp.lt.s32.totalorder %s32, 5
      %p340 = pnand %p338, %p339
      %p341 = pneg %p340
      // Predicated region
      $region9: #{tpu_custom_call.1} parent=5 // pred_check
        _
      $region10: #{tpu_custom_call.1} parent=5 // pred_check_branch
        %343 = sbr.rel (%p340) target = $region12
      $region11: #{tpu_custom_call.1} parent=5 // pred_region
        %s344 = ssub.s32 %s32, 1
        // Predicated region
        $region13: #{tpu_custom_call.1} parent=11 // pred_check
          %p345 = pneg %p157
        $region14: #{tpu_custom_call.1} parent=11 // pred_check_branch
          %347 = sbr.rel (%p345) target = $region16
        $region15: #{tpu_custom_call.1} parent=11 // pred_region
          %349 = vsyncadd [#allocation9], 0
          %s350 = sshll.u32 %s4, 4
          %s351 = int_to_ptr.hbm [resolvable:$true] %s350
          %s352 = sshll.u32 [#allocation10], 4
          %s353 = int_to_ptr.vmem [resolvable:$true] %s352
          %358 = dma.hbm_to_vmem [thread:$0]  %s351, 2048, %s353, [#allocation9], 128, 128, 8
        $region16: #{tpu_custom_call.1} parent=11 // pred_fallthru
          _
        // Predicated region
        $region17: #{tpu_custom_call.1} parent=11 // pred_check
          %p359 = pneg %p178
        $region18: #{tpu_custom_call.1} parent=11 // pred_check_branch
          %361 = sbr.rel (%p359) target = $region20
        $region19: #{tpu_custom_call.1} parent=11 // pred_region
          _
        $region20: #{tpu_custom_call.1} parent=11 // pred_fallthru
          _
        // Predicated region
        $region21: #{tpu_custom_call.1} parent=11 // pred_check
          %p362 = pneg %p199
        $region22: #{tpu_custom_call.1} parent=11 // pred_check_branch
          %364 = sbr.rel (%p362) target = $region24
        $region23: #{tpu_custom_call.1} parent=11 // pred_region
          %366 = vsyncadd [#allocation12], 0
          %s367 = sshll.u32 %s6, 4
          %s368 = int_to_ptr.hbm [resolvable:$true] %s367
          %s369 = sshll.u32 [#allocation11], 4
          %s370 = int_to_ptr.vmem [resolvable:$true] %s369
          %375 = dma.hbm_to_vmem [thread:$0]  %s368, 2048, %s370, [#allocation12], 128, 128, 8
        $region24: #{tpu_custom_call.1} parent=11 // pred_fallthru
          _
        // Predicated region
        $region25: #{tpu_custom_call.1} parent=11 // pred_check
          %p376 = pneg %p220
        $region26: #{tpu_custom_call.1} parent=11 // pred_check_branch
          %378 = sbr.rel (%p376) target = $region28
        $region27: #{tpu_custom_call.1} parent=11 // pred_region
          _
        $region28: #{tpu_custom_call.1} parent=11 // pred_fallthru
          _
        // Predicated region
        $region29: #{tpu_custom_call.1} parent=11 // pred_check
          %p379 = pneg %p241
        $region30: #{tpu_custom_call.1} parent=11 // pred_check_branch
          %381 = sbr.rel (%p379) target = $region32
        $region31: #{tpu_custom_call.1} parent=11 // pred_region
          %383 = vsyncadd [#allocation12], 0
          %s384 = sshll.u32 %s8, 4
          %s385 = int_to_ptr.hbm [resolvable:$true] %s384
          %s386 = sshll.u32 [#allocation13], 4
          %s387 = int_to_ptr.vmem [resolvable:$true] %s386
          %392 = dma.hbm_to_vmem [thread:$0]  %s385, 2048, %s387, [#allocation12], 128, 128, 8
        $region32: #{tpu_custom_call.1} parent=11 // pred_fallthru
          _
        // Predicated region
        $region33: #{tpu_custom_call.1} parent=11 // pred_check
          %p393 = pneg %p262
        $region34: #{tpu_custom_call.1} parent=11 // pred_check_branch
          %395 = sbr.rel (%p393) target = $region36
        $region35: #{tpu_custom_call.1} parent=11 // pred_region
          _
        $region36: #{tpu_custom_call.1} parent=11 // pred_fallthru
          _
        // Predicated region
        $region37: #{tpu_custom_call.1} parent=11 // pred_check
          %p396 = pneg %p283
        $region38: #{tpu_custom_call.1} parent=11 // pred_check_branch
          %398 = sbr.rel (%p396) target = $region40
        $region39: #{tpu_custom_call.1} parent=11 // pred_region
          %400 = vsyncadd [#allocation15], 0
          %s401 = sshll.u32 %s10, 4
          %s402 = int_to_ptr.hbm [resolvable:$true] %s401
          %s403 = sshll.u32 [#allocation14], 4
          %s404 = int_to_ptr.vmem [resolvable:$true] %s403
          %409 = dma.hbm_to_vmem [thread:$0]  %s402, 2048, %s404, [#allocation15], 128, 128, 8
        $region40: #{tpu_custom_call.1} parent=11 // pred_fallthru
          _
        // Predicated region
        $region41: #{tpu_custom_call.1} parent=11 // pred_check
          %p410 = pneg %p304
        $region42: #{tpu_custom_call.1} parent=11 // pred_check_branch
          %412 = sbr.rel (%p410) target = $region44
        $region43: #{tpu_custom_call.1} parent=11 // pred_region
          _
        $region44: #{tpu_custom_call.1} parent=11 // pred_fallthru
          _
      $region12: #{tpu_custom_call.1} parent=5 // pred_fallthru
        _
      %p413 = scmp.lt.s32.totalorder %s32, 4
      // Predicated region
      $region45: #{tpu_custom_call.1} parent=5 // pred_check
        %p414 = pneg %p413
      $region46: #{tpu_custom_call.1} parent=5 // pred_check_branch
        %416 = sbr.rel (%p414) target = $region48
      $region47: #{tpu_custom_call.1} parent=5 // pred_region
        // Predicated region
        $region49: #{tpu_custom_call.1} parent=47 // pred_check
          %p417 = pneg %p52
        $region50: #{tpu_custom_call.1} parent=47 // pred_check_branch
          %419 = sbr.rel (%p417) target = $region52
        $region51: #{tpu_custom_call.1} parent=47 // pred_region
          %s420 = sand.u32 %s42, 1
          %s421 = scalar_lea.sflag [#allocation3], %s420
          %s422 = sand.u32 %s42, 1
          %s423 = smul.addr %s422, 4
          %s424 = scalar_lea.vmem [#allocation2], %s423
          %426 = vsyncadd %s421, 0
          %s427 = smul.addr %s32, 2
          %s428 = smul.addr %s427, 2
          %s429 = scalar_lea.hbm %s0, %s428
          %s431 = sshll.u32 %s429, 4
          %s432 = int_to_ptr.hbm [resolvable:$true] %s431
          %s433 = sshll.u32 %s424, 4
          %s434 = int_to_ptr.vmem [resolvable:$true] %s433
          %436 = dma.hbm_to_vmem [thread:$0]  %s432, 64, %s434, %s421
        $region52: #{tpu_custom_call.1} parent=47 // pred_fallthru
          _
        // Predicated region
        $region53: #{tpu_custom_call.1} parent=47 // pred_check
          %p437 = pneg %p78
        $region54: #{tpu_custom_call.1} parent=47 // pred_check_branch
          %439 = sbr.rel (%p437) target = $region56
        $region55: #{tpu_custom_call.1} parent=47 // pred_region
          %s440 = sand.u32 %s32, 1
          %s441 = scalar_lea.sflag [#allocation6], %s440
          %s442 = sand.u32 %s68, 1
          %s443 = smul.addr %s442, 2
          %s444 = scalar_lea.vmem [#allocation5], %s443
          %446 = vsyncadd %s441, 0
          %s447 = smul.addr %s32, 2
          %s448 = scalar_lea.hbm %s1, %s447
          %s450 = sshll.u32 %s448, 4
          %s451 = int_to_ptr.hbm [resolvable:$true] %s450
          %s452 = sshll.u32 %s444, 4
          %s453 = int_to_ptr.vmem [resolvable:$true] %s452
          %455 = dma.hbm_to_vmem [thread:$0]  %s451, 32, %s453, %s441
        $region56: #{tpu_custom_call.1} parent=47 // pred_fallthru
          _
        // Predicated region
        $region57: #{tpu_custom_call.1} parent=47 // pred_check
          %p456 = pneg %p104
        $region58: #{tpu_custom_call.1} parent=47 // pred_check_branch
          %458 = sbr.rel (%p456) target = $region60
        $region59: #{tpu_custom_call.1} parent=47 // pred_region
          %s459 = sand.u32 %s32, 1
          %s460 = scalar_lea.sflag [#allocation6], %s459
          %s461 = sand.u32 %s94, 1
          %s462 = smul.addr %s461, 256
          %s463 = scalar_lea.vmem [#allocation7], %s462
          %465 = vsyncadd %s460, 0
          %s466 = smul.addr %s32, 32
          %s467 = smul.addr %s466, 8
          %s468 = scalar_lea.hbm %s2, %s467
          %s469 = sshll.u32 %s468, 4
          %s470 = int_to_ptr.hbm [resolvable:$true] %s469
          %s471 = sshll.u32 %s463, 4
          %s472 = int_to_ptr.vmem [resolvable:$true] %s471
          %477 = dma.hbm_to_vmem [thread:$0]  %s470, 4096, %s472, %s460, 128, 128, 8
        $region60: #{tpu_custom_call.1} parent=47 // pred_fallthru
          _
        // Predicated region
        $region61: #{tpu_custom_call.1} parent=47 // pred_check
          %p478 = pneg %p130
        $region62: #{tpu_custom_call.1} parent=47 // pred_check_branch
          %480 = sbr.rel (%p478) target = $region64
        $region63: #{tpu_custom_call.1} parent=47 // pred_region
          %s481 = sand.u32 %s32, 1
          %s482 = scalar_lea.sflag [#allocation9], %s481
          %s483 = sand.u32 %s120, 1
          %s484 = scalar_lea.vmem [#allocation8], %s483
          %486 = vsyncadd %s482, 0
          %s487 = scalar_lea.hbm %s3, %s32
          %s489 = sshll.u32 %s487, 4
          %s490 = int_to_ptr.hbm [resolvable:$true] %s489
          %s491 = sshll.u32 %s484, 4
          %s492 = int_to_ptr.vmem [resolvable:$true] %s491
          %494 = dma.hbm_to_vmem [thread:$0]  %s490, 16, %s492, %s482
        $region64: #{tpu_custom_call.1} parent=47 // pred_fallthru
          _
      $region48: #{tpu_custom_call.1} parent=5 // pred_fallthru
        _
      %p495 = scmp.le.s32.totalorder 1, %s32
      %p496 = scmp.lt.s32.totalorder %s32, 5
      %p497 = pnand %p495, %p496
      %p498 = pneg %p497
      // Predicated region
      $region65: #{tpu_custom_call.1} parent=5 // pred_check
        _
      $region66: #{tpu_custom_call.1} parent=5 // pred_check_branch
        %500 = sbr.rel (%p497) target = $region68
      $region67: #{tpu_custom_call.1} parent=5 // pred_region
        %s501 = ssub.s32 %s32, 1
        %s502 = sand.u32 %s45, 1
        %s503 = scalar_lea.sflag [#allocation3], %s502
        %s504 = sand.u32 %s45, 1
        %s505 = smul.addr %s504, 4
        %s506 = scalar_lea.vmem [#allocation2], %s505
        // Predicated region
        $region69: #{tpu_custom_call.1} parent=67 // pred_check
          %p507 = pneg %p58
        $region70: #{tpu_custom_call.1} parent=67 // pred_check_branch
          %509 = sbr.rel (%p507) target = $region72
        $region71: #{tpu_custom_call.1} parent=67 // pred_region
          %511 = dma.done %s503, 64
        $region72: #{tpu_custom_call.1} parent=67 // pred_fallthru
          _
        %s512 = sand.u32 %s37, 1
        %s513 = scalar_lea.sflag [#allocation6], %s512
        %s514 = sand.u32 %s71, 1
        %s515 = smul.addr %s514, 2
        %s516 = scalar_lea.vmem [#allocation5], %s515
        // Predicated region
        $region73: #{tpu_custom_call.1} parent=67 // pred_check
          %p517 = pneg %p84
        $region74: #{tpu_custom_call.1} parent=67 // pred_check_branch
          %519 = sbr.rel (%p517) target = $region76
        $region75: #{tpu_custom_call.1} parent=67 // pred_region
          %521 = dma.done %s513, 32
        $region76: #{tpu_custom_call.1} parent=67 // pred_fallthru
          _
        %s522 = sand.u32 %s37, 1
        %s523 = scalar_lea.sflag [#allocation6], %s522
        %s524 = sand.u32 %s97, 1
        %s525 = smul.addr %s524, 256
        %s526 = scalar_lea.vmem [#allocation7], %s525
        // Predicated region
        $region77: #{tpu_custom_call.1} parent=67 // pred_check
          %p527 = pneg %p110
        $region78: #{tpu_custom_call.1} parent=67 // pred_check_branch
          %529 = sbr.rel (%p527) target = $region80
        $region79: #{tpu_custom_call.1} parent=67 // pred_region
          %531 = dma.done %s523, 4096
        $region80: #{tpu_custom_call.1} parent=67 // pred_fallthru
          _
        %s532 = sand.u32 %s37, 1
        %s533 = scalar_lea.sflag [#allocation9], %s532
        %s534 = sand.u32 %s123, 1
        %s535 = scalar_lea.vmem [#allocation8], %s534
        // Predicated region
        $region81: #{tpu_custom_call.1} parent=67 // pred_check
          %p536 = pneg %p136
        $region82: #{tpu_custom_call.1} parent=67 // pred_check_branch
          %538 = sbr.rel (%p536) target = $region84
        $region83: #{tpu_custom_call.1} parent=67 // pred_region
          %540 = dma.done %s533, 16
        $region84: #{tpu_custom_call.1} parent=67 // pred_fallthru
          _
        // Predicated region
        $region85: #{tpu_custom_call.1} parent=67 // pred_check
          %p541 = pneg %p157
        $region86: #{tpu_custom_call.1} parent=67 // pred_check_branch
          %543 = sbr.rel (%p541) target = $region88
        $region87: #{tpu_custom_call.1} parent=67 // pred_region
          %545 = dma.done [#allocation9], 2048
        $region88: #{tpu_custom_call.1} parent=67 // pred_fallthru
          _
        // Predicated region
        $region89: #{tpu_custom_call.1} parent=67 // pred_check
          %p546 = pneg %p199
        $region90: #{tpu_custom_call.1} parent=67 // pred_check_branch
          %548 = sbr.rel (%p546) target = $region92
        $region91: #{tpu_custom_call.1} parent=67 // pred_region
          %550 = dma.done [#allocation12], 2048
        $region92: #{tpu_custom_call.1} parent=67 // pred_fallthru
          _
        // Predicated region
        $region93: #{tpu_custom_call.1} parent=67 // pred_check
          %p551 = pneg %p241
        $region94: #{tpu_custom_call.1} parent=67 // pred_check_branch
          %553 = sbr.rel (%p551) target = $region96
        $region95: #{tpu_custom_call.1} parent=67 // pred_region
          %555 = dma.done [#allocation12], 2048
        $region96: #{tpu_custom_call.1} parent=67 // pred_fallthru
          _
        // Predicated region
        $region97: #{tpu_custom_call.1} parent=67 // pred_check
          %p556 = pneg %p283
        $region98: #{tpu_custom_call.1} parent=67 // pred_check_branch
          %558 = sbr.rel (%p556) target = $region100
        $region99: #{tpu_custom_call.1} parent=67 // pred_region
          %560 = dma.done [#allocation15], 2048
        $region100: #{tpu_custom_call.1} parent=67 // pred_fallthru
          _
        %s561 = sand.u32 %s45, 1
        %s562 = scalar_lea.sflag [#allocation3], %s561
        %s563 = sand.u32 %s45, 1
        %s564 = smul.addr %s563, 4
        %s565 = scalar_lea.vmem [#allocation2], %s564
        %p566 = pneg %p58
        %p567 = pneg %p55
        %s568 = sand.u32 %s37, 1
        %s569 = scalar_lea.sflag [#allocation6], %s568
        %s570 = sand.u32 %s71, 1
        %s571 = smul.addr %s570, 2
        %s572 = scalar_lea.vmem [#allocation5], %s571
        %p573 = pneg %p84
        %p574 = pneg %p81
        %s575 = sand.u32 %s37, 1
        %s576 = scalar_lea.sflag [#allocation6], %s575
        %s577 = sand.u32 %s97, 1
        %s578 = smul.addr %s577, 256
        %s579 = scalar_lea.vmem [#allocation7], %s578
        %p580 = pneg %p110
        %p581 = pneg %p107
        %s582 = sand.u32 %s37, 1
        %s583 = scalar_lea.sflag [#allocation9], %s582
        %s584 = sand.u32 %s123, 1
        %s585 = scalar_lea.vmem [#allocation8], %s584
        %p586 = pneg %p136
        %p587 = pneg %p133
        %p588 = pneg %p157
        %p589 = pneg %p154
        %p590 = pneg %p178
        %p591 = pneg %p175
        %p592 = pneg %p199
        %p593 = pneg %p196
        %p594 = pneg %p220
        %p595 = pneg %p217
        %p596 = pneg %p241
        %p597 = pneg %p238
        %p598 = pneg %p262
        %p599 = pneg %p259
        %p600 = pneg %p283
        %p601 = pneg %p280
        %p602 = pneg %p304
        %p603 = pneg %p301
        %p604 = pneg %p330
        %p605 = pneg %p327
        %s606 = sand.u32 %s317, 1
        %s607 = scalar_lea.sflag [#allocation4], %s606
        %s608 = sand.u32 %s317, 1
        %s609 = smul.addr %s608, 2
        %s610 = scalar_lea.vmem [#allocation16], %s609
        %v611 = vld [vmem:[%s506] sm:$0xf]
        %v612 = vld [vmem:[%s526] sm:$0xff]
        %v613 = vld [vmem:[%s526 + $0x8] sm:$0xff]
        %v614 = vld [vmem:[%s526 + $0x10] sm:$0xff]
        %v615 = vld [vmem:[%s526 + $0x18] sm:$0xff]
        %v616 = vld [vmem:[%s526 + $0x20] sm:$0xff]
        %v617 = vld [vmem:[%s526 + $0x28] sm:$0xff]
        %v618 = vld [vmem:[%s526 + $0x30] sm:$0xff]
        %v619 = vld [vmem:[%s526 + $0x38] sm:$0xff]
        %v620 = vld [vmem:[%s526 + $0x40] sm:$0xff]
        %v621 = vld [vmem:[%s526 + $0x48] sm:$0xff]
        %v622 = vld [vmem:[%s526 + $0x50] sm:$0xff]
        %v623 = vld [vmem:[%s526 + $0x58] sm:$0xff]
        %v624 = vld [vmem:[%s526 + $0x60] sm:$0xff]
        %v625 = vld [vmem:[%s526 + $0x68] sm:$0xff]
        %v626 = vld [vmem:[%s526 + $0x70] sm:$0xff]
        %v627 = vld [vmem:[%s526 + $0x78] sm:$0xff]
        %v628 = vld [vmem:[%s526 + $0x80] sm:$0xff]
        %v629 = vld [vmem:[%s526 + $0x88] sm:$0xff]
        %v630 = vld [vmem:[%s526 + $0x90] sm:$0xff]
        %v631 = vld [vmem:[%s526 + $0x98] sm:$0xff]
        %v632 = vld [vmem:[%s526 + $0xa0] sm:$0xff]
        %v633 = vld [vmem:[%s526 + $0xa8] sm:$0xff]
        %v634 = vld [vmem:[%s526 + $0xb0] sm:$0xff]
        %v635 = vld [vmem:[%s526 + $0xb8] sm:$0xff]
        %v636 = vld [vmem:[%s526 + $0xc0] sm:$0xff]
        %v637 = vld [vmem:[%s526 + $0xc8] sm:$0xff]
        %v638 = vld [vmem:[%s526 + $0xd0] sm:$0xff]
        %v639 = vld [vmem:[%s526 + $0xd8] sm:$0xff]
        %v640 = vld [vmem:[%s526 + $0xe0] sm:$0xff]
        %v641 = vld [vmem:[%s526 + $0xe8] sm:$0xff]
        %v642 = vld [vmem:[%s526 + $0xf0] sm:$0xff]
        %v643 = vld [vmem:[%s526 + $0xf8] sm:$0xff]
        %v644 = vld [vmem:[%s535] sm:$0x1]
        %v646 = vperm.slane %v644, 0
        %649 = vst [vmem:[#allocation1] ss:$4 sm:$0xff] %v611
        %v650 = vld.sshfl [vmem:[#allocation1] sm:$0xff pattern:$0x73625140]
        %v651 = vld.sshfl [vmem:[#allocation1 + $0x8] sm:$0xff pattern:$0x73625140]
        %654 = vmatpush.msra.mxu0 %v627
        %655 = vmatpush.msra.mxu0 %v626
        %656 = vmatpush.msra.mxu0 %v625
        %657 = vmatpush.msra.mxu0 %v624
        %658 = vmatpush.msra.mxu0 %v623
        %659 = vmatpush.msra.mxu0 %v622
        %660 = vmatpush.msra.mxu0 %v621
        %661 = vmatpush.msra.mxu0 %v620
        %662 = vmatpush.msra.mxu0 %v619
        %663 = vmatpush.msra.mxu0 %v618
        %664 = vmatpush.msra.mxu0 %v617
        %665 = vmatpush.msra.mxu0 %v616
        %666 = vmatpush.msra.mxu0 %v615
        %667 = vmatpush.msra.mxu0 %v614
        %668 = vmatpush.msra.mxu0 %v613
        %669 = vmatpush.msra.mxu0 %v612
        %670 = vmatmul.f32.gmra.mxu0 %v650
        %v671 = vpop.f32.mrf.mxu0
        %v672 = vadd.f32 %v646, %v671
        %673 = vdwg.mxu0
        %674 = vmatpush.msra.mxu0 %v643
        %675 = vmatpush.msra.mxu0 %v642
        %676 = vmatpush.msra.mxu0 %v641
        %677 = vmatpush.msra.mxu0 %v640
        %678 = vmatpush.msra.mxu0 %v639
        %679 = vmatpush.msra.mxu0 %v638
        %680 = vmatpush.msra.mxu0 %v637
        %681 = vmatpush.msra.mxu0 %v636
        %682 = vmatpush.msra.mxu0 %v635
        %683 = vmatpush.msra.mxu0 %v634
        %684 = vmatpush.msra.mxu0 %v633
        %685 = vmatpush.msra.mxu0 %v632
        %686 = vmatpush.msra.mxu0 %v631
        %687 = vmatpush.msra.mxu0 %v630
        %688 = vmatpush.msra.mxu0 %v629
        %689 = vmatpush.msra.mxu0 %v628
        %690 = vmatmul.f32.gmra.mxu0 %v651
        %v691 = vpop.f32.mrf.mxu0
        %v692 = vadd.f32 %v672, %v691
        %693 = vdwg.mxu0
        %v694 = vld [vmem:[%s516] sm:$0x3]
        %v695 = vld [vmem:[#allocation10] sm:$0xff]
        %v696 = vld [vmem:[#allocation10 + $0x8] sm:$0xff]
        %v697 = vld [vmem:[#allocation10 + $0x10] sm:$0xff]
        %v698 = vld [vmem:[#allocation10 + $0x18] sm:$0xff]
        %v699 = vld [vmem:[#allocation10 + $0x20] sm:$0xff]
        %v700 = vld [vmem:[#allocation10 + $0x28] sm:$0xff]
        %v701 = vld [vmem:[#allocation10 + $0x30] sm:$0xff]
        %v702 = vld [vmem:[#allocation10 + $0x38] sm:$0xff]
        %v703 = vld [vmem:[#allocation10 + $0x40] sm:$0xff]
        %v704 = vld [vmem:[#allocation10 + $0x48] sm:$0xff]
        %v705 = vld [vmem:[#allocation10 + $0x50] sm:$0xff]
        %v706 = vld [vmem:[#allocation10 + $0x58] sm:$0xff]
        %v707 = vld [vmem:[#allocation10 + $0x60] sm:$0xff]
        %v708 = vld [vmem:[#allocation10 + $0x68] sm:$0xff]
        %v709 = vld [vmem:[#allocation10 + $0x70] sm:$0xff]
        %v710 = vld [vmem:[#allocation10 + $0x78] sm:$0xff]
        %v711 = vld [vmem:[%s5] sm:$0x1]
        %v713 = vperm.slane %v711, 0
        %715 = vmatpush.msra.mxu0 %v710
        %716 = vmatpush.msra.mxu0 %v709
        %717 = vmatpush.msra.mxu0 %v708
        %718 = vmatpush.msra.mxu0 %v707
        %719 = vmatpush.msra.mxu0 %v706
        %720 = vmatpush.msra.mxu0 %v705
        %721 = vmatpush.msra.mxu0 %v704
        %722 = vmatpush.msra.mxu0 %v703
        %723 = vmatpush.msra.mxu0 %v702
        %724 = vmatpush.msra.mxu0 %v701
        %725 = vmatpush.msra.mxu0 %v700
        %726 = vmatpush.msra.mxu0 %v699
        %727 = vmatpush.msra.mxu0 %v698
        %728 = vmatpush.msra.mxu0 %v697
        %729 = vmatpush.msra.mxu0 %v696
        %730 = vmatpush.msra.mxu0 %v695
        %731 = vmatmul.f32.gmra.mxu0 %v694
        %v732 = vpop.f32.mrf.mxu0
        %v733 = vadd.f32 %v713, %v732
        %734 = vdwg.mxu0
        %v735 = vxor.u32 %v733, 2147483648
        %v736 = vmul.f32 %v735, 1.442695
        %v737 = vpow.pop %v736
        %v738 = vadd.f32 %v737, 1.0
        %v739 = vrcp.pop %v738
        %v740 = vmul.f32 %v738, %v739
        %v741 = vsub.f32 1.0, %v740
        %v742 = vmul.f32 %v739, %v741
        %v743 = vadd.f32 %v739, %v742
        %vm744 = vweird.f32 %v738
        %vm745 = vweird.f32 %v739
        %vm746 = vmor %vm744, %vm745
        %v747 = vsel %vm746, %v739, %v743
        %v748 = vand.u32 2147483647, %v738
        %vm749 = vcmp.eq.f32.partialorder %v748, 8.507059e+37
        %v750 = vand.u32 %v738, 2147483648
        %v751 = vor.u32 1.1754944e-38, %v750
        %v752 = vsel %vm749, %v751, %v747
        %v753 = vmul.f32 1.0, %v752
        %v754 = vld [vmem:[#allocation11] sm:$0xff]
        %v755 = vld [vmem:[#allocation11 + $0x8] sm:$0xff]
        %v756 = vld [vmem:[#allocation11 + $0x10] sm:$0xff]
        %v757 = vld [vmem:[#allocation11 + $0x18] sm:$0xff]
        %v758 = vld [vmem:[#allocation11 + $0x20] sm:$0xff]
        %v759 = vld [vmem:[#allocation11 + $0x28] sm:$0xff]
        %v760 = vld [vmem:[#allocation11 + $0x30] sm:$0xff]
        %v761 = vld [vmem:[#allocation11 + $0x38] sm:$0xff]
        %v762 = vld [vmem:[#allocation11 + $0x40] sm:$0xff]
        %v763 = vld [vmem:[#allocation11 + $0x48] sm:$0xff]
        %v764 = vld [vmem:[#allocation11 + $0x50] sm:$0xff]
        %v765 = vld [vmem:[#allocation11 + $0x58] sm:$0xff]
        %v766 = vld [vmem:[#allocation11 + $0x60] sm:$0xff]
        %v767 = vld [vmem:[#allocation11 + $0x68] sm:$0xff]
        %v768 = vld [vmem:[#allocation11 + $0x70] sm:$0xff]
        %v769 = vld [vmem:[#allocation11 + $0x78] sm:$0xff]
        %v770 = vld [vmem:[%s7] sm:$0x1]
        %v772 = vperm.slane %v770, 0
        %774 = vmatpush.msra.mxu0 %v769
        %775 = vmatpush.msra.mxu0 %v768
        %776 = vmatpush.msra.mxu0 %v767
        %777 = vmatpush.msra.mxu0 %v766
        %778 = vmatpush.msra.mxu0 %v765
        %779 = vmatpush.msra.mxu0 %v764
        %780 = vmatpush.msra.mxu0 %v763
        %781 = vmatpush.msra.mxu0 %v762
        %782 = vmatpush.msra.mxu0 %v761
        %783 = vmatpush.msra.mxu0 %v760
        %784 = vmatpush.msra.mxu0 %v759
        %785 = vmatpush.msra.mxu0 %v758
        %786 = vmatpush.msra.mxu0 %v757
        %787 = vmatpush.msra.mxu0 %v756
        %788 = vmatpush.msra.mxu0 %v755
        %789 = vmatpush.msra.mxu0 %v754
        %790 = vmatmul.f32.gmra.mxu0 %v694
        %v791 = vpop.f32.mrf.mxu0
        %v792 = vadd.f32 %v772, %v791
        %793 = vdwg.mxu0
        %v794 = vxor.u32 %v792, 2147483648
        %v795 = vmul.f32 %v794, 1.442695
        %v796 = vpow.pop %v795
        %v797 = vadd.f32 %v796, 1.0
        %v798 = vrcp.pop %v797
        %v799 = vmul.f32 %v797, %v798
        %v800 = vsub.f32 1.0, %v799
        %v801 = vmul.f32 %v798, %v800
        %v802 = vadd.f32 %v798, %v801
        %vm803 = vweird.f32 %v797
        %vm804 = vweird.f32 %v798
        %vm805 = vmor %vm803, %vm804
        %v806 = vsel %vm805, %v798, %v802
        %v807 = vand.u32 2147483647, %v797
        %vm808 = vcmp.eq.f32.partialorder %v807, 8.507059e+37
        %v809 = vand.u32 %v797, 2147483648
        %v810 = vor.u32 1.1754944e-38, %v809
        %v811 = vsel %vm808, %v810, %v806
        %v812 = vmul.f32 1.0, %v811
        %v813 = vld [vmem:[#allocation13] sm:$0xff]
        %v814 = vld [vmem:[#allocation13 + $0x8] sm:$0xff]
        %v815 = vld [vmem:[#allocation13 + $0x10] sm:$0xff]
        %v816 = vld [vmem:[#allocation13 + $0x18] sm:$0xff]
        %v817 = vld [vmem:[#allocation13 + $0x20] sm:$0xff]
        %v818 = vld [vmem:[#allocation13 + $0x28] sm:$0xff]
        %v819 = vld [vmem:[#allocation13 + $0x30] sm:$0xff]
        %v820 = vld [vmem:[#allocation13 + $0x38] sm:$0xff]
        %v821 = vld [vmem:[#allocation13 + $0x40] sm:$0xff]
        %v822 = vld [vmem:[#allocation13 + $0x48] sm:$0xff]
        %v823 = vld [vmem:[#allocation13 + $0x50] sm:$0xff]
        %v824 = vld [vmem:[#allocation13 + $0x58] sm:$0xff]
        %v825 = vld [vmem:[#allocation13 + $0x60] sm:$0xff]
        %v826 = vld [vmem:[#allocation13 + $0x68] sm:$0xff]
        %v827 = vld [vmem:[#allocation13 + $0x70] sm:$0xff]
        %v828 = vld [vmem:[#allocation13 + $0x78] sm:$0xff]
        %v829 = vld [vmem:[%s9] sm:$0x1]
        %v831 = vperm.slane %v829, 0
        %833 = vmatpush.msra.mxu0 %v828
        %834 = vmatpush.msra.mxu0 %v827
        %835 = vmatpush.msra.mxu0 %v826
        %836 = vmatpush.msra.mxu0 %v825
        %837 = vmatpush.msra.mxu0 %v824
        %838 = vmatpush.msra.mxu0 %v823
        %839 = vmatpush.msra.mxu0 %v822
        %840 = vmatpush.msra.mxu0 %v821
        %841 = vmatpush.msra.mxu0 %v820
        %842 = vmatpush.msra.mxu0 %v819
        %843 = vmatpush.msra.mxu0 %v818
        %844 = vmatpush.msra.mxu0 %v817
        %845 = vmatpush.msra.mxu0 %v816
        %846 = vmatpush.msra.mxu0 %v815
        %847 = vmatpush.msra.mxu0 %v814
        %848 = vmatpush.msra.mxu0 %v813
        %849 = vmatmul.f32.gmra.mxu0 %v694
        %v850 = vpop.f32.mrf.mxu0
        %v851 = vadd.f32 %v831, %v850
        %852 = vdwg.mxu0
        %v853 = vmax.f32 %v851, 0.0
        %v854 = vld [vmem:[#allocation14] sm:$0xff]
        %v855 = vld [vmem:[#allocation14 + $0x8] sm:$0xff]
        %v856 = vld [vmem:[#allocation14 + $0x10] sm:$0xff]
        %v857 = vld [vmem:[#allocation14 + $0x18] sm:$0xff]
        %v858 = vld [vmem:[#allocation14 + $0x20] sm:$0xff]
        %v859 = vld [vmem:[#allocation14 + $0x28] sm:$0xff]
        %v860 = vld [vmem:[#allocation14 + $0x30] sm:$0xff]
        %v861 = vld [vmem:[#allocation14 + $0x38] sm:$0xff]
        %v862 = vld [vmem:[#allocation14 + $0x40] sm:$0xff]
        %v863 = vld [vmem:[#allocation14 + $0x48] sm:$0xff]
        %v864 = vld [vmem:[#allocation14 + $0x50] sm:$0xff]
        %v865 = vld [vmem:[#allocation14 + $0x58] sm:$0xff]
        %v866 = vld [vmem:[#allocation14 + $0x60] sm:$0xff]
        %v867 = vld [vmem:[#allocation14 + $0x68] sm:$0xff]
        %v868 = vld [vmem:[#allocation14 + $0x70] sm:$0xff]
        %v869 = vld [vmem:[#allocation14 + $0x78] sm:$0xff]
        %v870 = vld [vmem:[%s11] sm:$0x1]
        %v872 = vperm.slane %v870, 0
        %874 = vmatpush.msra.mxu0 %v869
        %875 = vmatpush.msra.mxu0 %v868
        %876 = vmatpush.msra.mxu0 %v867
        %877 = vmatpush.msra.mxu0 %v866
        %878 = vmatpush.msra.mxu0 %v865
        %879 = vmatpush.msra.mxu0 %v864
        %880 = vmatpush.msra.mxu0 %v863
        %881 = vmatpush.msra.mxu0 %v862
        %882 = vmatpush.msra.mxu0 %v861
        %883 = vmatpush.msra.mxu0 %v860
        %884 = vmatpush.msra.mxu0 %v859
        %885 = vmatpush.msra.mxu0 %v858
        %886 = vmatpush.msra.mxu0 %v857
        %887 = vmatpush.msra.mxu0 %v856
        %888 = vmatpush.msra.mxu0 %v855
        %889 = vmatpush.msra.mxu0 %v854
        %890 = vmatmul.f32.gmra.mxu0 %v853
        %v891 = vpop.f32.mrf.mxu0
        %v892 = vadd.f32 %v872, %v891
        %893 = vdwg.mxu0
        %v894 = vmul.f32 %v753, %v692
        %v895 = vmul.f32 %v812, %v892
        %v896 = vadd.f32 %v894, %v895
        %897 = vst [vmem:[%s610] sm:$0x3] %v896
        %s898 = sand.u32 %s317, 1
        %s899 = scalar_lea.sflag [#allocation4], %s898
        %s900 = sand.u32 %s317, 1
        %s901 = smul.addr %s900, 2
        %s902 = scalar_lea.vmem [#allocation16], %s901
        // Predicated region
        $region101: #{tpu_custom_call.1} parent=67 // pred_check
          %p903 = pneg %p327
        $region102: #{tpu_custom_call.1} parent=67 // pred_check_branch
          %905 = sbr.rel (%p903) target = $region104
        $region103: #{tpu_custom_call.1} parent=67 // pred_region
          %907 = vsyncadd %s899, 0
          %s908 = smul.addr %s37, 2
          %s909 = scalar_lea.hbm %s12, %s908
          %s911 = sshll.u32 %s902, 4
          %s912 = int_to_ptr.vmem [resolvable:$true] %s911
          %s913 = sshll.u32 %s909, 4
          %s914 = int_to_ptr.hbm [resolvable:$true] %s913
          %916 = dma.vmem_to_hbm [thread:$0]  %s912, 32, %s914, %s899
        $region104: #{tpu_custom_call.1} parent=67 // pred_fallthru
          _
      $region68: #{tpu_custom_call.1} parent=5 // pred_fallthru
        _
      %p917 = scmp.le.s32.totalorder 2, %s32
      // Predicated region
      $region105: #{tpu_custom_call.1} parent=5 // pred_check
        %p918 = pneg %p917
      $region106: #{tpu_custom_call.1} parent=5 // pred_check_branch
        %920 = sbr.rel (%p918) target = $region108
      $region107: #{tpu_custom_call.1} parent=5 // pred_region
        %s921 = ssub.s32 %s32, 2
        // Predicated region
        $region109: #{tpu_custom_call.1} parent=107 // pred_check
          %p922 = pneg %p333
        $region110: #{tpu_custom_call.1} parent=107 // pred_check_branch
          %924 = sbr.rel (%p922) target = $region112
        $region111: #{tpu_custom_call.1} parent=107 // pred_region
          %s925 = sand.u32 %s318, 1
          %s926 = scalar_lea.sflag [#allocation4], %s925
          %s927 = sand.u32 %s318, 1
          %s928 = smul.addr %s927, 2
          %s929 = scalar_lea.vmem [#allocation16], %s928
          %931 = dma.done %s926, 32
        $region112: #{tpu_custom_call.1} parent=107 // pred_fallthru
          _
      $region108: #{tpu_custom_call.1} parent=5 // pred_fallthru
        _
    $region6: #{tpu_custom_call.1} parent=1 // loop_footer
      %s36 = sadd.s32 1, %s32
    $region7: #{tpu_custom_call.1} parent=1 // loop_footer_branch
      %31 = sbr.rel target = $region3
    $region8: #{tpu_custom_call.1} parent=1 // loop_exit
      _
    %932 = vsyncpa [#allocation3], 1
    %s933 = scalar_lea.sflag [#allocation3], 1
    %934 = vsyncpa %s933, 1
    %935 = vsyncpa [#allocation6], 1
    %s936 = scalar_lea.sflag [#allocation6], 1
    %937 = vsyncpa %s936, 1
    %938 = vsyncpa [#allocation9], 1
    %s939 = scalar_lea.sflag [#allocation9], 1
    %940 = vsyncpa %s939, 1
    %941 = vsyncpa [#allocation12], 1
    %942 = vsyncpa [#allocation15], 1
    %943 = vsyncpa [#allocation4], 1
    %s944 = scalar_lea.sflag [#allocation4], 1
    %945 = vsyncpa %s944, 1

</llo_original>
